<compile_context>
chip_gen: v7x
topology: tpu7x:2x2x1
jax: 0.10.0
libtpu: 0.0.40
codegen_flags: <defaults>
</compile_context>

<pallas_src>
import math

import jax
import jax.numpy as jnp
from jax.experimental import pallas as pl
from jax.experimental.pallas import tpu as pltpu


def _learnable_bias_kernel(x_ref, b_ref, o_ref):
    # x_ref: (tile_rows, H), b_ref: (1, H) -> VPU broadcast add over sublanes.
    o_ref[...] = (x_ref[...] + b_ref[...]).astype(o_ref.dtype)


def _ceil_div(a, b):
    return -(-a // b)


def _sublane_multiple(dtype):
    # f32 -> 8 sublanes per vreg, bf16 -> 16, int8/fp8 -> 32.
    itemsize = jnp.dtype(dtype).itemsize
    return max(8, 8 * (4 // max(itemsize, 1)))


def _tpu_vmem_capacity_bytes():
    try:
        info = pltpu.get_tpu_info()
        return int(getattr(info, "vmem_capacity_bytes", 128 << 20))
    except Exception:
        return 128 << 20


def learnable_bias(x, bias, *, tile_bytes_target=None, donate_input=False):
    """out = x + bias (broadcast over last axis). x: [..., H], bias: [H]."""
    orig_shape = x.shape
    hidden = orig_shape[-1]
    assert bias.shape == (hidden,), "bias must have shape (out_chn,)"

    # Keep the add + store in the activation dtype (native bf16 VPU on
    # v6e/v7x; keeps the store into a bf16 out ref legal on every chip).
    bias = bias.astype(x.dtype)

    x2d = x.reshape(-1, hidden)          # metadata-only reshape
    rows = x2d.shape[0]

    # Lane-dense fold: fold = 128 / gcd(hidden, 128) rows into the lane axis,
    # making the stored last dim lcm(hidden, 128) (a multiple of 128 ->
    # unmasked vst). Only when it is a pure reshape (rows % fold == 0).
    fold = 128 // math.gcd(hidden, 128)
    if fold > 1 and rows % fold == 0:
        x2d = x2d.reshape(rows // fold, fold * hidden)
        b2d = jnp.tile(bias, fold).reshape(1, fold * hidden)
    else:
        fold = 1
        b2d = bias.reshape(1, hidden)

    eff_rows, eff_hidden = x2d.shape
    itemsize = jnp.dtype(x.dtype).itemsize
    sub = _sublane_multiple(x.dtype)

    # Generation-aware budgets: v7x has 64 MiB VMEM per TC (cap ~40 MiB),
    # v5e/v6e have 128 MiB (cap ~96 MiB). ~8 MiB tiles amortize the ~0.35 us
    # per-grid-step overhead on every generation.
    vmem_cap = _tpu_vmem_capacity_bytes()
    small_vmem = vmem_cap <= (80 << 20)
    if tile_bytes_target is None:
        tile_bytes_target = 8 << 20
    if small_vmem:
        tile_bytes_target = min(tile_bytes_target, 8 << 20)
    vmem_cap_limit = (40 << 20) if small_vmem else (96 << 20)

    # Largest sublane-aligned row count within the per-tile byte budget.
    max_rows_for_budget = max(
        sub, (tile_bytes_target // (eff_hidden * itemsize)) // sub * sub
    )
    tile_rows = int(min(eff_rows, max_rows_for_budget))

    # v7x dual-TC: the "parallel" row axis only shards across TensorCores if
    # there are >= 2 grid steps; prefer an even step count for balance. Only
    # bother once the array is large enough (> ~2 MiB) to care.
    total_bytes = eff_rows * eff_hidden * itemsize
    steps = _ceil_div(eff_rows, tile_rows)
    if total_bytes > (2 << 20) and steps % 2 == 1 and eff_rows >= 2 * sub:
        tgt = steps + 1
        tile_rows = max(sub, _ceil_div(_ceil_div(eff_rows, tgt), sub) * sub)
        steps = _ceil_div(eff_rows, tile_rows)

    grid = (steps,)

    # Resident VMEM ~= double-buffered input tile + output tile (+ bias).
    # Raise the scoped limit only above the smallest default (16 MiB on v5e,
    # with headroom); cap per generation.
    tile_bytes = tile_rows * eff_hidden * itemsize
    vmem_need = 4 * tile_bytes + 2 * eff_hidden * itemsize
    vmem_limit = None
    if vmem_need > (12 << 20):
        vmem_limit = int(min(vmem_need + (4 << 20), vmem_cap_limit))

    # Small-tile regime only: 3rd input buffer hides exposed DMA-issue
    # latency. At the recommended multi-MiB tiles, depth 2 is sufficient.
    x_spec_kwargs = {}
    if tile_bytes < (256 << 10) and steps >= 3:
        x_spec_kwargs["pipeline_mode"] = pl.Buffered(3)

    call_kwargs = {}
    if donate_input:
        # Alias x (operand 0) with the output: removes the separate output
        # HBM allocation when the caller no longer needs x.
        call_kwargs["input_output_aliases"] = {0: 0}

    out2d = pl.pallas_call(
        _learnable_bias_kernel,
        out_shape=jax.ShapeDtypeStruct((eff_rows, eff_hidden), x.dtype),
        grid_spec=pltpu.PrefetchScalarGridSpec(
            num_scalar_prefetch=0,
            grid=grid,
            in_specs=[
                # row tile; last dim is always the full (lane-dense) extent
                pl.BlockSpec((tile_rows, eff_hidden), lambda i: (i, 0),
                             **x_spec_kwargs),
                # bias: same single block for every grid step
                pl.BlockSpec((1, eff_hidden), lambda i: (0, 0)),
            ],
            out_specs=pl.BlockSpec((tile_rows, eff_hidden), lambda i: (i, 0)),
        ),
        compiler_params=pltpu.CompilerParams(
            dimension_semantics=("parallel",),
            vmem_limit_bytes=vmem_limit,
        ),
        **call_kwargs,
    )(x2d, b2d)

    if fold > 1:
        out2d = out2d.reshape(rows, hidden)
    return out2d.reshape(orig_shape)


if __name__ == "__main__":
    key = jax.random.PRNGKey(0)
    k1, k2, k3, k4 = jax.random.split(key, 4)

    # --- Test 1: module-native small shape, hidden=32 (< 128 -> fold=4) ---
    batch, seq, hidden = 2, 8, 32
    x = jax.random.normal(k1, (batch, seq, hidden), dtype=jnp.float32)
    bias_zero = jnp.zeros((hidden,), dtype=jnp.float32)     # nn.Parameter init
    bias_nonzero = 0.01 * jnp.arange(hidden, dtype=jnp.float32)

    out_zero = learnable_bias(x, bias_zero)
    jax.block_until_ready(out_zero)
    assert jnp.allclose(out_zero, x), "zero-bias case must be identity"

    out = learnable_bias(x, bias_nonzero)
    jax.block_until_ready(out)
    assert jnp.allclose(out, x + bias_nonzero[None, None, :], atol=1e-6), \
        "mismatch vs reference (fold path, hidden=32)"

    # --- Test 2: hidden=96 (gcd-based fold: gcd(96,128)=32 -> fold=4) ---
    x96 = jax.random.normal(k2, (2, 8, 96), dtype=jnp.float32)
    b96 = 0.25 - 0.002 * jnp.arange(96, dtype=jnp.float32)
    out96 = learnable_bias(x96, b96)
    jax.block_until_ready(out96)
    assert jnp.allclose(out96, x96 + b96[None, None, :], atol=1e-6), \
        "mismatch vs reference (gcd fold path, hidden=96)"

    # --- Test 3a: hidden=256, forced tiny tiles -> multi-step grid with a
    #     partial trailing block and the Buffered(3) small-tile path ---
    x256 = jax.random.normal(k3, (2, 10, 256), dtype=jnp.float32)
    b256 = 0.5 + 0.001 * jnp.arange(256, dtype=jnp.float32)
    out256 = learnable_bias(x256, b256, tile_bytes_target=8 * 1024)
    jax.block_until_ready(out256)
    assert jnp.allclose(out256, x256 + b256[None, None, :], atol=1e-6), \
        "mismatch vs reference (tiled path, hidden=256)"

    # --- Test 3b: bf16 activations with f32 bias (dtype-coercion path) ---
    xb = x256.astype(jnp.bfloat16)
    outb = learnable_bias(xb, b256)
    jax.block_until_ready(outb)
    refb = xb + b256.astype(jnp.bfloat16)[None, None, :]
    assert jnp.allclose(outb.astype(jnp.float32), refb.astype(jnp.float32),
                        atol=1e-2), "mismatch vs reference (bf16 path)"

    # --- Test 4: input/output aliasing path ---
    x4 = jax.random.normal(k4, (batch, seq, hidden), dtype=jnp.float32)
    ref4 = x4 + bias_nonzero[None, None, :]
    out4 = learnable_bias(x4, bias_nonzero, donate_input=True)
    jax.block_until_ready(out4)
    assert jnp.allclose(out4, ref4, atol=1e-6), "mismatch vs reference (alias path)"

    print("KERNEL_OK")
</pallas_src>

<mosaic_0001>
module attributes {stable_mosaic.version = 11 : i64} {
  func.func @_learnable_bias_kernel(%arg0: i32, %arg1: memref<4x128xf32, #tpu.memory_space<vmem>>, %arg2: memref<1x128xf32, #tpu.memory_space<vmem>>, %arg3: memref<4x128xf32, #tpu.memory_space<vmem>>) attributes {dimension_semantics = [#tpu.dimension_semantics<parallel>], iteration_bounds = array<i64: 1>, scalar_prefetch = 0 : i64, scratch_operands = 0 : i64, tpu.core_type = #tpu.core_type<tc>, window_params = [{transform_indices = @transform_0, window_bounds = array<i64: 4, 128>}, {pipeline_mode = #tpu.pipeline_mode<synchronous>, transform_indices = @transform_1, window_bounds = array<i64: 1, 128>}, {transform_indices = @transform_2, window_bounds = array<i64: 4, 128>}]} {
    %c0 = arith.constant 0 : index
    %c0_0 = arith.constant 0 : index
    %0 = vector.load %arg1[%c0, %c0_0] : memref<4x128xf32, #tpu.memory_space<vmem>>, vector<4x128xf32>
    %c0_1 = arith.constant 0 : index
    %c0_2 = arith.constant 0 : index
    %1 = vector.load %arg2[%c0_1, %c0_2] : memref<1x128xf32, #tpu.memory_space<vmem>>, vector<1x128xf32>
    %2 = vector.broadcast %1 : vector<1x128xf32> to vector<4x128xf32>
    %3 = arith.addf %0, %2 : vector<4x128xf32>
    %c0_3 = arith.constant 0 : index
    %c0_4 = arith.constant 0 : index
    %4 = vector.load %arg3[%c0_3, %c0_4] : memref<4x128xf32, #tpu.memory_space<vmem>>, vector<4x128xf32>
    tpu.vector_store %arg3[%c0_3, %c0_4], %3 {strides = array<i32>} : memref<4x128xf32, #tpu.memory_space<vmem>>, vector<4x128xf32>,
    return
  }
  func.func @transform_0(%arg0: i32) -> (i32, i32) {
    %c0_i32 = arith.constant 0 : i32
    %c0_i32_0 = arith.constant 0 : i32
    return %arg0, %c0_i32 : i32, i32
  }
  func.func @transform_1(%arg0: i32) -> (i32, i32) {
    %c0_i32 = arith.constant 0 : i32
    %c0_i32_0 = arith.constant 0 : i32
    %c0_i32_1 = arith.constant 0 : i32
    return %c0_i32, %c0_i32_0 : i32, i32
  }
  func.func @transform_2(%arg0: i32) -> (i32, i32) {
    %c0_i32 = arith.constant 0 : i32
    %c0_i32_0 = arith.constant 0 : i32
    return %arg0, %c0_i32 : i32, i32
  }
}

</mosaic_0001>

<llo_original>
// kernel: tpu_custom_call.1
$region0: #{tpu_custom_call.1}
  #allocation0 [shape = 'u32[]', space=smem, size = 0x4, offset = 0x4, fixed_abs, tag = 'smem constant byte address 0x4 - core index']
  #allocation1 [shape = 'u32[144,128]{1,0:T(1,128)}', space=vmem, size = 0x12000, scoped, tag = 'internal scratch']
  %s0 = inlined_call_operand.hbm [shape: f32[4,128], index: 0, kind: input, shape index: {}]
  %s1 = inlined_call_operand.vmem [shape: f32[1,128], index: 1, kind: input, shape index: {}]
  %s2 = inlined_call_operand.hbm [shape: f32[4,128], index: 2, kind: output, shape index: {}]
  %s3 = sld [smem:[#allocation0]]
  $region22: #{tpu_custom_call.1} parent=0
    _
  %s5 = ssub.s32 1, %s3
  %s6 = scalar_select 0, %s5, %s3
  $region1: #{tpu_custom_call.1} parent=0
    #allocation2 [shape = 'u8[2048]{0}', space=vmem, size = 0x800, scoped, tag = 'input window, operand 0, single buffered']
    #allocation3 [shape = 's32[1]{0}', space=sflag, size = 0x4, scoped, tag = 'scoped memory for tpu_custom_call.1']
    #allocation4 [shape = 's32[1]{0}', space=sflag, size = 0x4, scoped, tag = 'scoped memory for tpu_custom_call.1']
    #allocation5 [shape = 'u8[2048]{0}', space=vmem, size = 0x800, scoped, tag = 'output window, operand 0, single buffered']
    %7 = vsyncpa [#allocation3], 0
    %8 = vsyncpa [#allocation4], 0
    // Predicated region
    $region2: #{tpu_custom_call.1} parent=1 // pred_check
      _
    $region3: #{tpu_custom_call.1} parent=1 // pred_check_branch
      %10 = sbr.rel (0) target = $region5
    $region4: #{tpu_custom_call.1} parent=1 // pred_region
      %s12 = ssub.s32 64, 64
      %13 = vsyncadd [#allocation3], %s12
      %s15 = sshll.u32 [#allocation2], 4
      %s16 = int_to_ptr.vmem [resolvable:$true] %s15
      %18 = dma.hbm_to_vmem [thread:$0]  %s0, 64, %s16, [#allocation3]
    $region5: #{tpu_custom_call.1} parent=1 // pred_fallthru
      _
    // Predicated region
    $region6: #{tpu_custom_call.1} parent=1 // pred_check
      _
    $region7: #{tpu_custom_call.1} parent=1 // pred_check_branch
      %20 = sbr.rel (0) target = $region9
    $region8: #{tpu_custom_call.1} parent=1 // pred_region
      _
    $region9: #{tpu_custom_call.1} parent=1 // pred_fallthru
      _
    // Predicated region
    $region10: #{tpu_custom_call.1} parent=1 // pred_check
      _
    $region11: #{tpu_custom_call.1} parent=1 // pred_check_branch
      %22 = sbr.rel (0) target = $region13
    $region12: #{tpu_custom_call.1} parent=1 // pred_region
      %23 = dma.done [#allocation3], 64
    $region13: #{tpu_custom_call.1} parent=1 // pred_fallthru
      _
    %v24 = vld [vmem:[#allocation2] sm:$0xf]
    %v25 = vld [vmem:[%s1] sm:$0x1]
    %v27 = vlaneseq
    %v28 = vshrl.u32 %v27, 7
    %v29 = vsub.s32 0, %v28
    %v30 = vrot.slane %v25, %v29
    %v32 = vadd.f32 %v24, %v30
    %33 = vst [vmem:[#allocation5] sm:$0xf] %v32
    // Predicated region
    $region14: #{tpu_custom_call.1} parent=1 // pred_check
      _
    $region15: #{tpu_custom_call.1} parent=1 // pred_check_branch
      %35 = sbr.rel (0) target = $region17
    $region16: #{tpu_custom_call.1} parent=1 // pred_region
      %s37 = ssub.s32 64, 64
      %38 = vsyncadd [#allocation4], %s37
      %s40 = sshll.u32 [#allocation5], 4
      %s41 = int_to_ptr.vmem [resolvable:$true] %s40
      %43 = dma.vmem_to_hbm [thread:$0]  %s41, 64, %s2, [#allocation4]
    $region17: #{tpu_custom_call.1} parent=1 // pred_fallthru
      _
    // Predicated region
    $region18: #{tpu_custom_call.1} parent=1 // pred_check
      _
    $region19: #{tpu_custom_call.1} parent=1 // pred_check_branch
      %45 = sbr.rel (0) target = $region21
    $region20: #{tpu_custom_call.1} parent=1 // pred_region
      %46 = dma.done [#allocation4], 64
    $region21: #{tpu_custom_call.1} parent=1 // pred_fallthru
      _
    %47 = vsyncpa [#allocation3], 1
    %48 = vsyncpa [#allocation4], 1

</llo_original>
